<compile_context>
chip_gen: v7x
topology: tpu7x:2x2x1
jax: 0.10.0
libtpu: 0.0.40
codegen_flags: <defaults>
</compile_context>

<pallas_src>
import functools

import jax
import jax.numpy as jnp
from jax.experimental import pallas as pl
from jax.experimental.pallas import tpu as pltpu

_LANE = 128      # f32 lane width
_SUBLANE = 8     # f32 sublane count


def _round_up(x, m):
    return (x + m - 1) // m * m


def _device_kind():
    try:
        return jax.devices()[0].device_kind.lower()
    except Exception:
        return ""


def _num_tensorcores():
    # v4 / v5p megacore and v7x expose 2 TensorCores worth of parallel grid work.
    kind = _device_kind()
    return 2 if any(t in kind for t in ("v4", "v5p", "7")) else 1


def _mxu_width():
    # v6e / v7x have a 256-wide MXU; v5e (and older) are 128x128.
    kind = _device_kind()
    return 256 if any(t in kind for t in ("v6", "7")) else 128


def _vmem_capacity_bytes():
    try:
        return int(pltpu.get_tpu_info().vmem_capacity_bytes)
    except Exception:
        pass
    # Fallback: 64 MiB on v7x, 128 MiB on v5e/v6e.
    return 64 * 1024 * 1024 if "7" in _device_kind() else 128 * 1024 * 1024


def _choose_batch_tile(batch, num_cores):
    """Largest tile in {256,...,16} with <=15% padded rows; fall back to one sublane group.
    Then, if the chip has 2 TensorCores, shrink the tile until the parallel grid has >=2 steps."""
    b8 = _round_up(max(batch, _SUBLANE), _SUBLANE)
    tm = _SUBLANE
    for cand in (256, 128, 64, 32, 16):
        padded = _round_up(b8, cand)
        if (padded - batch) / padded <= 0.15:
            tm = cand
            break
    b_pad = _round_up(b8, tm)
    while num_cores > 1 and (b_pad // tm) < num_cores and tm > _SUBLANE:
        tm //= 2
    return tm, b_pad


def _fused_mlp_kernel(*refs, num_layers):
    """(Linear + bias + ReLU) x num_layers on one batch tile.

    refs = (x_ref, w0, b0, w1, b1, ..., w_{L-1}, b_{L-1}, o_ref)
      x_ref: (tm, obs_shape)         raw (feature-unpadded) activation tile
      w_l:   (in_pad_l, out_pad_l)   bf16, (in, out) layout, zero-padded per layer
      b_l:   (1, out_pad_l)          f32, zero-padded
      o_ref: (tm, out_pad_{L-1})     lane-dense output tile (sliced by the wrapper)
    """
    x_ref = refs[0]
    o_ref = refs[1 + 2 * num_layers]
    h = x_ref[...].astype(jnp.float32)
    for l in range(num_layers):                                  # static unroll (L is small)
        w = refs[1 + 2 * l][...]
        b = refs[2 + 2 * l][...]
        y = jnp.dot(h.astype(w.dtype), w,
                    preferred_element_type=jnp.float32)          # bf16 MXU, f32 accumulation
        h = jnp.maximum(y + b, 0.0)                              # f32 bias + ReLU epilogue
    o_ref[...] = h.astype(o_ref.dtype)


def init_fc_encoder_params(key, obs_shape, hidden_size_list, dtype=jnp.float32):
    """Deterministic synthetic params mirroring nn.Linear shapes (torch: W is (out, in))."""
    sizes = [obs_shape] + list(hidden_size_list)
    params = []
    for i in range(len(sizes) - 1):
        key, kw, kb = jax.random.split(key, 3)
        fan_in, fan_out = sizes[i], sizes[i + 1]
        bound = 1.0 / (fan_in ** 0.5)
        w = jax.random.uniform(kw, (fan_out, fan_in), dtype, -bound, bound)
        b = jax.random.uniform(kb, (fan_out,), dtype, -bound, bound)
        params.append((w, b))
    return params


def prepare_fc_encoder_params(params, obs_shape, *, weight_dtype=jnp.bfloat16, mxu_width=128):
    """One-time prep: transpose torch (out,in) -> (in,out); pad each layer individually.

    Layer 0 keeps its contraction dim equal to the raw obs_shape (so x needs no feature
    padding).  Every layer's output dim is padded to 128 (or a 256 multiple on 256-wide MXU
    chips when >128); the next layer's input padding matches it.  Zero padding keeps the math
    exact: padded output lanes get 0 weight + 0 bias -> ReLU -> 0, and stay 0 downstream.
    """
    def pad_feat(n):
        return _LANE if n <= _LANE else _round_up(n, max(_LANE, mxu_width))

    weights, biases = [], []
    prev_pad = obs_shape                  # first layer consumes the unpadded obs features
    for w, b in params:
        out_f, in_f = w.shape
        assert in_f <= prev_pad
        out_pad = pad_feat(out_f)
        w_p = jnp.zeros((prev_pad, out_pad), weight_dtype)
        w_p = w_p.at[:in_f, :out_f].set(w.T.astype(weight_dtype))
        b_p = jnp.zeros((1, out_pad), jnp.float32).at[0, :out_f].set(b.astype(jnp.float32))
        weights.append(w_p)
        biases.append(b_p)
        prev_pad = out_pad
    return weights, biases


def fc_encoder_forward(x, weights, biases, out_features, *, single_buffer_weights=True):
    """x: (B, obs_shape); weights[l]: (in_pad_l, out_pad_l) bf16; biases[l]: (1, out_pad_l) f32."""
    batch, in_f = x.shape
    num_layers = len(weights)
    out_pad = weights[-1].shape[1]
    itemsize = x.dtype.itemsize

    # Batch tiling: bound round-up waste, keep >=2 parallel steps on 2-TC chips when possible.
    tm, b_pad = _choose_batch_tile(batch, _num_tensorcores())
    grid = (b_pad // tm,)

    # Pad only the batch dim (features stay at obs_shape -> no extra full pass over x).
    x_p = x if b_pad == batch else jnp.zeros((b_pad, in_f), x.dtype).at[:batch].set(x)

    def _resident_spec(shape):
        kwargs = {}
        if single_buffer_weights:
            kwargs["pipeline_mode"] = pl.Buffered(1)   # constant block -> single buffering
        return pl.BlockSpec(shape, lambda i: (0, 0), **kwargs)

    in_specs = [pl.BlockSpec((tm, in_f), lambda i: (i, 0))]      # activation tile
    operands = [x_p]
    for w, b in zip(weights, biases):
        in_specs += [_resident_spec(w.shape), _resident_spec(b.shape)]
        operands += [w, b]
    out_specs = pl.BlockSpec((tm, out_pad), lambda i: (i, 0))    # lane-dense output tile

    # VMEM residency: params (x1 when single-buffered, else x2), double-buffered in/out
    # activation tiles, plus inter-layer f32 activations held in compiler scratch.
    param_bytes = sum(int(a.size) * a.dtype.itemsize for a in operands[1:])
    max_pad = max(w.shape[1] for w in weights)
    act_bytes = 2 * tm * (in_f + out_pad) * itemsize
    scratch_bytes = 2 * tm * max_pad * 4
    resident = (1 if single_buffer_weights else 2) * param_bytes + act_bytes + scratch_bytes
    vmem_cap = _vmem_capacity_bytes()
    vmem_limit = int(min(0.8 * vmem_cap, max(16 * 1024 * 1024, 1.25 * resident)))
    # TODO(synk): when resident weights exceed ~half of VMEM (very large encoders on v7x),
    # stream weights per layer with a manual double-buffered make_async_copy (pl.ANY inputs)
    # instead of keeping every layer VMEM-resident.

    flops = 2 * b_pad * sum(w.shape[0] * w.shape[1] for w in weights)
    bytes_accessed = param_bytes + int(x_p.size) * itemsize + b_pad * out_pad * itemsize

    out = pl.pallas_call(
        functools.partial(_fused_mlp_kernel, num_layers=num_layers),
        out_shape=jax.ShapeDtypeStruct((b_pad, out_pad), x.dtype),
        grid=grid,
        in_specs=in_specs,
        out_specs=out_specs,
        compiler_params=pltpu.CompilerParams(
            dimension_semantics=("parallel",),       # batch grid -> megacore / 2-TC sharding
            vmem_limit_bytes=vmem_limit,
        ),
        cost_estimate=pl.CostEstimate(
            flops=int(flops), transcendentals=0, bytes_accessed=int(bytes_accessed)),
    )(*operands)

    return out[:batch, :out_features]


if __name__ == "__main__":
    # Small shapes consistent with FCEncoder: 1-D obs, a few FC layers.
    B = 2
    obs_shape = 16
    hidden_size_list = [32, 32, 32]
    out_features = hidden_size_list[-1]

    key = jax.random.PRNGKey(0)
    key, kx = jax.random.split(key)
    x = jax.random.normal(kx, (B, obs_shape), jnp.float32)

    params = init_fc_encoder_params(key, obs_shape, hidden_size_list)

    # One-time param prep (outside the forward path): transpose + per-layer pad + bf16 cast.
    weights, biases = prepare_fc_encoder_params(params, obs_shape, mxu_width=_mxu_width())

    # Probe once (eagerly) whether single-buffered resident weights (pl.Buffered(1)) are
    # supported by this JAX/Mosaic build; fall back to default double-buffering if not.
    single = True
    try:
        jax.block_until_ready(
            fc_encoder_forward(x, weights, biases, out_features, single_buffer_weights=True))
    except Exception:
        single = False

    fwd = jax.jit(lambda xx, ws, bs: fc_encoder_forward(
        xx, ws, bs, out_features, single_buffer_weights=single))
    out = jax.block_until_ready(fwd(x, weights, biases))

    assert out.shape == (B, out_features), out.shape
    assert out.dtype == jnp.float32

    # Reference check in plain JAX (same math as the PyTorch Linear + ReLU chain, full f32).
    ref = x
    for w, b in params:
        ref = jnp.maximum(ref @ w.T + b, 0.0)
    # bf16 weights/activation casts in the kernel -> loosened tolerance (per review note).
    err = float(jnp.max(jnp.abs(out - ref)))
    assert jnp.allclose(out, ref, atol=1e-2, rtol=2e-2), err

    # TODO(synk): res_block=True (ResFCBlock) and norm_type paths are not implemented;
    # this covers the default res_block=False ReLU-MLP forward.
    print("KERNEL_OK")
</pallas_src>

<mosaic_0001>
module attributes {stable_mosaic.version = 11 : i64} {
  func.func @_fused_mlp_kernel(%arg0: i32, %arg1: memref<8x16xf32, #tpu.memory_space<vmem>>, %arg2: memref<16x128xbf16, #tpu.memory_space<vmem>>, %arg3: memref<1x128xf32, #tpu.memory_space<vmem>>, %arg4: memref<128x128xbf16, #tpu.memory_space<vmem>>, %arg5: memref<1x128xf32, #tpu.memory_space<vmem>>, %arg6: memref<128x128xbf16, #tpu.memory_space<vmem>>, %arg7: memref<1x128xf32, #tpu.memory_space<vmem>>, %arg8: memref<8x128xf32, #tpu.memory_space<vmem>>) attributes {dimension_semantics = [#tpu.dimension_semantics<parallel>], iteration_bounds = array<i64: 1>, scalar_prefetch = 0 : i64, scratch_operands = 0 : i64, tpu.core_type = #tpu.core_type<tc>, window_params = [{transform_indices = @transform_0, window_bounds = array<i64: 8, 16>}, {pipeline_mode = #tpu.pipeline_mode<synchronous>, transform_indices = @transform_1, window_bounds = array<i64: 16, 128>}, {pipeline_mode = #tpu.pipeline_mode<synchronous>, transform_indices = @transform_2, window_bounds = array<i64: 1, 128>}, {pipeline_mode = #tpu.pipeline_mode<synchronous>, transform_indices = @transform_3, window_bounds = array<i64: 128, 128>}, {pipeline_mode = #tpu.pipeline_mode<synchronous>, transform_indices = @transform_4, window_bounds = array<i64: 1, 128>}, {pipeline_mode = #tpu.pipeline_mode<synchronous>, transform_indices = @transform_5, window_bounds = array<i64: 128, 128>}, {pipeline_mode = #tpu.pipeline_mode<synchronous>, transform_indices = @transform_6, window_bounds = array<i64: 1, 128>}, {transform_indices = @transform_7, window_bounds = array<i64: 8, 128>}]} {
    %c0 = arith.constant 0 : index
    %c0_0 = arith.constant 0 : index
    %0 = vector.load %arg1[%c0, %c0_0] : memref<8x16xf32, #tpu.memory_space<vmem>>, vector<8x16xf32>
    %c0_1 = arith.constant 0 : index
    %c0_2 = arith.constant 0 : index
    %1 = vector.load %arg2[%c0_1, %c0_2] : memref<16x128xbf16, #tpu.memory_space<vmem>>, vector<16x128xbf16>
    %c0_3 = arith.constant 0 : index
    %c0_4 = arith.constant 0 : index
    %2 = vector.load %arg3[%c0_3, %c0_4] : memref<1x128xf32, #tpu.memory_space<vmem>>, vector<1x128xf32>
    %3 = arith.truncf %0 : vector<8x16xf32> to vector<8x16xbf16>
    %cst = arith.constant dense<0.000000e+00> : vector<8x128xf32>
    %4 = tpu.matmul %3, %1, %cst {dimension_numbers = #tpu.dot_dimension_numbers<[1], [0], [0], [1], [0, 0, 1, 1], [], []>} : vector<8x16xbf16>, vector<16x128xbf16>, vector<8x128xf32> -> vector<8x128xf32>
    %5 = vector.broadcast %2 : vector<1x128xf32> to vector<8x128xf32>
    %6 = arith.addf %4, %5 : vector<8x128xf32>
    %cst_5 = arith.constant 0.000000e+00 : f32
    %7 = vector.broadcast %cst_5 : f32 to vector<8x128xf32>
    %8 = arith.maximumf %6, %7 : vector<8x128xf32>
    %c0_6 = arith.constant 0 : index
    %c0_7 = arith.constant 0 : index
    %9 = vector.load %arg4[%c0_6, %c0_7] : memref<128x128xbf16, #tpu.memory_space<vmem>>, vector<128x128xbf16>
    %c0_8 = arith.constant 0 : index
    %c0_9 = arith.constant 0 : index
    %10 = vector.load %arg5[%c0_8, %c0_9] : memref<1x128xf32, #tpu.memory_space<vmem>>, vector<1x128xf32>
    %11 = arith.truncf %8 : vector<8x128xf32> to vector<8x128xbf16>
    %cst_10 = arith.constant dense<0.000000e+00> : vector<8x128xf32>
    %12 = tpu.matmul %11, %9, %cst_10 {dimension_numbers = #tpu.dot_dimension_numbers<[1], [0], [0], [1], [0, 0, 1, 1], [], []>} : vector<8x128xbf16>, vector<128x128xbf16>, vector<8x128xf32> -> vector<8x128xf32>
    %13 = vector.broadcast %10 : vector<1x128xf32> to vector<8x128xf32>
    %14 = arith.addf %12, %13 : vector<8x128xf32>
    %cst_11 = arith.constant 0.000000e+00 : f32
    %15 = vector.broadcast %cst_11 : f32 to vector<8x128xf32>
    %16 = arith.maximumf %14, %15 : vector<8x128xf32>
    %c0_12 = arith.constant 0 : index
    %c0_13 = arith.constant 0 : index
    %17 = vector.load %arg6[%c0_12, %c0_13] : memref<128x128xbf16, #tpu.memory_space<vmem>>, vector<128x128xbf16>
    %c0_14 = arith.constant 0 : index
    %c0_15 = arith.constant 0 : index
    %18 = vector.load %arg7[%c0_14, %c0_15] : memref<1x128xf32, #tpu.memory_space<vmem>>, vector<1x128xf32>
    %19 = arith.truncf %16 : vector<8x128xf32> to vector<8x128xbf16>
    %cst_16 = arith.constant dense<0.000000e+00> : vector<8x128xf32>
    %20 = tpu.matmul %19, %17, %cst_16 {dimension_numbers = #tpu.dot_dimension_numbers<[1], [0], [0], [1], [0, 0, 1, 1], [], []>} : vector<8x128xbf16>, vector<128x128xbf16>, vector<8x128xf32> -> vector<8x128xf32>
    %21 = vector.broadcast %18 : vector<1x128xf32> to vector<8x128xf32>
    %22 = arith.addf %20, %21 : vector<8x128xf32>
    %cst_17 = arith.constant 0.000000e+00 : f32
    %23 = vector.broadcast %cst_17 : f32 to vector<8x128xf32>
    %24 = arith.maximumf %22, %23 : vector<8x128xf32>
    %c0_18 = arith.constant 0 : index
    %c0_19 = arith.constant 0 : index
    %25 = vector.load %arg8[%c0_18, %c0_19] : memref<8x128xf32, #tpu.memory_space<vmem>>, vector<8x128xf32>
    tpu.vector_store %arg8[%c0_18, %c0_19], %24 {strides = array<i32>} : memref<8x128xf32, #tpu.memory_space<vmem>>, vector<8x128xf32>,
    return
  }
  func.func @transform_0(%arg0: i32) -> (i32, i32) {
    %c0_i32 = arith.constant 0 : i32
    %c0_i32_0 = arith.constant 0 : i32
    return %arg0, %c0_i32 : i32, i32
  }
  func.func @transform_1(%arg0: i32) -> (i32, i32) {
    %c0_i32 = arith.constant 0 : i32
    %c0_i32_0 = arith.constant 0 : i32
    %c0_i32_1 = arith.constant 0 : i32
    return %c0_i32, %c0_i32_0 : i32, i32
  }
  func.func @transform_2(%arg0: i32) -> (i32, i32) {
    %c0_i32 = arith.constant 0 : i32
    %c0_i32_0 = arith.constant 0 : i32
    %c0_i32_1 = arith.constant 0 : i32
    return %c0_i32, %c0_i32_0 : i32, i32
  }
  func.func @transform_3(%arg0: i32) -> (i32, i32) {
    %c0_i32 = arith.constant 0 : i32
    %c0_i32_0 = arith.constant 0 : i32
    %c0_i32_1 = arith.constant 0 : i32
    return %c0_i32, %c0_i32_0 : i32, i32
  }
  func.func @transform_4(%arg0: i32) -> (i32, i32) {
    %c0_i32 = arith.constant 0 : i32
    %c0_i32_0 = arith.constant 0 : i32
    %c0_i32_1 = arith.constant 0 : i32
    return %c0_i32, %c0_i32_0 : i32, i32
  }
  func.func @transform_5(%arg0: i32) -> (i32, i32) {
    %c0_i32 = arith.constant 0 : i32
    %c0_i32_0 = arith.constant 0 : i32
    %c0_i32_1 = arith.constant 0 : i32
    return %c0_i32, %c0_i32_0 : i32, i32
  }
  func.func @transform_6(%arg0: i32) -> (i32, i32) {
    %c0_i32 = arith.constant 0 : i32
    %c0_i32_0 = arith.constant 0 : i32
    %c0_i32_1 = arith.constant 0 : i32
    return %c0_i32, %c0_i32_0 : i32, i32
  }
  func.func @transform_7(%arg0: i32) -> (i32, i32) {
    %c0_i32 = arith.constant 0 : i32
    %c0_i32_0 = arith.constant 0 : i32
    return %arg0, %c0_i32 : i32, i32
  }
}

module attributes {stable_mosaic.version = 11 : i64} {
  func.func @_fused_mlp_kernel(%arg0: i32, %arg1: memref<8x16xf32, #tpu.memory_space<vmem>>, %arg2: memref<16x128xbf16, #tpu.memory_space<vmem>>, %arg3: memref<1x128xf32, #tpu.memory_space<vmem>>, %arg4: memref<128x128xbf16, #tpu.memory_space<vmem>>, %arg5: memref<1x128xf32, #tpu.memory_space<vmem>>, %arg6: memref<128x128xbf16, #tpu.memory_space<vmem>>, %arg7: memref<1x128xf32, #tpu.memory_space<vmem>>, %arg8: memref<8x128xf32, #tpu.memory_space<vmem>>) attributes {dimension_semantics = [#tpu.dimension_semantics<parallel>], iteration_bounds = array<i64: 1>, scalar_prefetch = 0 : i64, scratch_operands = 0 : i64, tpu.core_type = #tpu.core_type<tc>, window_params = [{transform_indices = @transform_0, window_bounds = array<i64: 8, 16>}, {pipeline_mode = #tpu.pipeline_mode<synchronous>, transform_indices = @transform_1, window_bounds = array<i64: 16, 128>}, {pipeline_mode = #tpu.pipeline_mode<synchronous>, transform_indices = @transform_2, window_bounds = array<i64: 1, 128>}, {pipeline_mode = #tpu.pipeline_mode<synchronous>, transform_indices = @transform_3, window_bounds = array<i64: 128, 128>}, {pipeline_mode = #tpu.pipeline_mode<synchronous>, transform_indices = @transform_4, window_bounds = array<i64: 1, 128>}, {pipeline_mode = #tpu.pipeline_mode<synchronous>, transform_indices = @transform_5, window_bounds = array<i64: 128, 128>}, {pipeline_mode = #tpu.pipeline_mode<synchronous>, transform_indices = @transform_6, window_bounds = array<i64: 1, 128>}, {transform_indices = @transform_7, window_bounds = array<i64: 8, 128>}]} {
    %c0 = arith.constant 0 : index
    %c0_0 = arith.constant 0 : index
    %0 = vector.load %arg1[%c0, %c0_0] : memref<8x16xf32, #tpu.memory_space<vmem>>, vector<8x16xf32>
    %c0_1 = arith.constant 0 : index
    %c0_2 = arith.constant 0 : index
    %1 = vector.load %arg2[%c0_1, %c0_2] : memref<16x128xbf16, #tpu.memory_space<vmem>>, vector<16x128xbf16>
    %c0_3 = arith.constant 0 : index
    %c0_4 = arith.constant 0 : index
    %2 = vector.load %arg3[%c0_3, %c0_4] : memref<1x128xf32, #tpu.memory_space<vmem>>, vector<1x128xf32>
    %3 = arith.truncf %0 : vector<8x16xf32> to vector<8x16xbf16>
    %cst = arith.constant dense<0.000000e+00> : vector<8x128xf32>
    %4 = tpu.matmul %3, %1, %cst {dimension_numbers = #tpu.dot_dimension_numbers<[1], [0], [0], [1], [0, 0, 1, 1], [], []>} : vector<8x16xbf16>, vector<16x128xbf16>, vector<8x128xf32> -> vector<8x128xf32>
    %5 = vector.broadcast %2 : vector<1x128xf32> to vector<8x128xf32>
    %6 = arith.addf %4, %5 : vector<8x128xf32>
    %cst_5 = arith.constant 0.000000e+00 : f32
    %7 = vector.broadcast %cst_5 : f32 to vector<8x128xf32>
    %8 = arith.maximumf %6, %7 : vector<8x128xf32>
    %c0_6 = arith.constant 0 : index
    %c0_7 = arith.constant 0 : index
    %9 = vector.load %arg4[%c0_6, %c0_7] : memref<128x128xbf16, #tpu.memory_space<vmem>>, vector<128x128xbf16>
    %c0_8 = arith.constant 0 : index
    %c0_9 = arith.constant 0 : index
    %10 = vector.load %arg5[%c0_8, %c0_9] : memref<1x128xf32, #tpu.memory_space<vmem>>, vector<1x128xf32>
    %11 = arith.truncf %8 : vector<8x128xf32> to vector<8x128xbf16>
    %cst_10 = arith.constant dense<0.000000e+00> : vector<8x128xf32>
    %12 = tpu.matmul %11, %9, %cst_10 {dimension_numbers = #tpu.dot_dimension_numbers<[1], [0], [0], [1], [0, 0, 1, 1], [], []>} : vector<8x128xbf16>, vector<128x128xbf16>, vector<8x128xf32> -> vector<8x128xf32>
    %13 = vector.broadcast %10 : vector<1x128xf32> to vector<8x128xf32>
    %14 = arith.addf %12, %13 : vector<8x128xf32>
    %cst_11 = arith.constant 0.000000e+00 : f32
    %15 = vector.broadcast %cst_11 : f32 to vector<8x128xf32>
    %16 = arith.maximumf %14, %15 : vector<8x128xf32>
    %c0_12 = arith.constant 0 : index
    %c0_13 = arith.constant 0 : index
    %17 = vector.load %arg6[%c0_12, %c0_13] : memref<128x128xbf16, #tpu.memory_space<vmem>>, vector<128x128xbf16>
    %c0_14 = arith.constant 0 : index
    %c0_15 = arith.constant 0 : index
    %18 = vector.load %arg7[%c0_14, %c0_15] : memref<1x128xf32, #tpu.memory_space<vmem>>, vector<1x128xf32>
    %19 = arith.truncf %16 : vector<8x128xf32> to vector<8x128xbf16>
    %cst_16 = arith.constant dense<0.000000e+00> : vector<8x128xf32>
    %20 = tpu.matmul %19, %17, %cst_16 {dimension_numbers = #tpu.dot_dimension_numbers<[1], [0], [0], [1], [0, 0, 1, 1], [], []>} : vector<8x128xbf16>, vector<128x128xbf16>, vector<8x128xf32> -> vector<8x128xf32>
    %21 = vector.broadcast %18 : vector<1x128xf32> to vector<8x128xf32>
    %22 = arith.addf %20, %21 : vector<8x128xf32>
    %cst_17 = arith.constant 0.000000e+00 : f32
    %23 = vector.broadcast %cst_17 : f32 to vector<8x128xf32>
    %24 = arith.maximumf %22, %23 : vector<8x128xf32>
    %c0_18 = arith.constant 0 : index
    %c0_19 = arith.constant 0 : index
    %25 = vector.load %arg8[%c0_18, %c0_19] : memref<8x128xf32, #tpu.memory_space<vmem>>, vector<8x128xf32>
    tpu.vector_store %arg8[%c0_18, %c0_19], %24 {strides = array<i32>} : memref<8x128xf32, #tpu.memory_space<vmem>>, vector<8x128xf32>,
    return
  }
  func.func @transform_0(%arg0: i32) -> (i32, i32) {
    %c0_i32 = arith.constant 0 : i32
    %c0_i32_0 = arith.constant 0 : i32
    return %arg0, %c0_i32 : i32, i32
  }
  func.func @transform_1(%arg0: i32) -> (i32, i32) {
    %c0_i32 = arith.constant 0 : i32
    %c0_i32_0 = arith.constant 0 : i32
    %c0_i32_1 = arith.constant 0 : i32
    return %c0_i32, %c0_i32_0 : i32, i32
  }
  func.func @transform_2(%arg0: i32) -> (i32, i32) {
    %c0_i32 = arith.constant 0 : i32
    %c0_i32_0 = arith.constant 0 : i32
    %c0_i32_1 = arith.constant 0 : i32
    return %c0_i32, %c0_i32_0 : i32, i32
  }
  func.func @transform_3(%arg0: i32) -> (i32, i32) {
    %c0_i32 = arith.constant 0 : i32
    %c0_i32_0 = arith.constant 0 : i32
    %c0_i32_1 = arith.constant 0 : i32
    return %c0_i32, %c0_i32_0 : i32, i32
  }
  func.func @transform_4(%arg0: i32) -> (i32, i32) {
    %c0_i32 = arith.constant 0 : i32
    %c0_i32_0 = arith.constant 0 : i32
    %c0_i32_1 = arith.constant 0 : i32
    return %c0_i32, %c0_i32_0 : i32, i32
  }
  func.func @transform_5(%arg0: i32) -> (i32, i32) {
    %c0_i32 = arith.constant 0 : i32
    %c0_i32_0 = arith.constant 0 : i32
    %c0_i32_1 = arith.constant 0 : i32
    return %c0_i32, %c0_i32_0 : i32, i32
  }
  func.func @transform_6(%arg0: i32) -> (i32, i32) {
    %c0_i32 = arith.constant 0 : i32
    %c0_i32_0 = arith.constant 0 : i32
    %c0_i32_1 = arith.constant 0 : i32
    return %c0_i32, %c0_i32_0 : i32, i32
  }
  func.func @transform_7(%arg0: i32) -> (i32, i32) {
    %c0_i32 = arith.constant 0 : i32
    %c0_i32_0 = arith.constant 0 : i32
    return %arg0, %c0_i32 : i32, i32
  }
}

</mosaic_0001>

<llo_original>
// kernel: tpu_custom_call.1
$region0: #{tpu_custom_call.1}
  #allocation0 [shape = 'u32[]', space=smem, size = 0x4, offset = 0x4, fixed_abs, tag = 'smem constant byte address 0x4 - core index']
  #allocation1 [shape = 'u32[144,128]{1,0:T(1,128)}', space=vmem, size = 0x12000, scoped, tag = 'internal scratch']
  %s0 = inlined_call_operand.hbm [shape: f32[8,16], index: 0, kind: input, shape index: {}]
  %s1 = inlined_call_operand.hbm [shape: bf16[16,128], index: 1, kind: input, shape index: {}]
  %s2 = inlined_call_operand.vmem [shape: f32[1,128], index: 2, kind: input, shape index: {}]
  %s3 = inlined_call_operand.hbm [shape: bf16[128,128], index: 3, kind: input, shape index: {}]
  %s4 = inlined_call_operand.vmem [shape: f32[1,128], index: 4, kind: input, shape index: {}]
  %s5 = inlined_call_operand.hbm [shape: bf16[128,128], index: 5, kind: input, shape index: {}]
  %s6 = inlined_call_operand.vmem [shape: f32[1,128], index: 6, kind: input, shape index: {}]
  %s7 = inlined_call_operand.hbm [shape: f32[8,128], index: 7, kind: output, shape index: {}]
  %s8 = sld [smem:[#allocation0]]
  $region54: #{tpu_custom_call.1} parent=0
    _
  %s10 = ssub.s32 1, %s8
  %s11 = scalar_select 0, %s10, %s8
  $region1: #{tpu_custom_call.1} parent=0
    #allocation2 [shape = 'u8[4096]{0}', space=vmem, size = 0x1000, scoped, tag = 'input window, operand 0, single buffered']
    #allocation3 [shape = 's32[1]{0}', space=sflag, size = 0x4, scoped, tag = 'scoped memory for tpu_custom_call.1']
    #allocation4 [shape = 's32[1]{0}', space=sflag, size = 0x4, scoped, tag = 'scoped memory for tpu_custom_call.1']
    #allocation5 [shape = 'u8[4096]{0}', space=vmem, size = 0x1000, scoped, tag = 'input window, operand 1, single buffered']
    #allocation6 [shape = 's32[1]{0}', space=sflag, size = 0x4, scoped, tag = 'scoped memory for tpu_custom_call.1']
    #allocation7 [shape = 'u8[32768]{0}', space=vmem, size = 0x8000, scoped, tag = 'input window, operand 3, single buffered']
    #allocation8 [shape = 'u8[32768]{0}', space=vmem, size = 0x8000, scoped, tag = 'input window, operand 5, single buffered']
    #allocation9 [shape = 's32[1]{0}', space=sflag, size = 0x4, scoped, tag = 'scoped memory for tpu_custom_call.1']
    #allocation10 [shape = 'u8[4096]{0}', space=vmem, size = 0x1000, scoped, tag = 'output window, operand 0, single buffered']
    %12 = vsyncpa [#allocation3], 0
    %13 = vsyncpa [#allocation6], 0
    %14 = vsyncpa [#allocation9], 0
    %15 = vsyncpa [#allocation4], 0
    // Predicated region
    $region2: #{tpu_custom_call.1} parent=1 // pred_check
      _
    $region3: #{tpu_custom_call.1} parent=1 // pred_check_branch
      %17 = sbr.rel (0) target = $region5
    $region4: #{tpu_custom_call.1} parent=1 // pred_region
      %s19 = ssub.s32 128, 128
      %20 = vsyncadd [#allocation3], %s19
      %s22 = sshll.u32 [#allocation2], 4
      %s23 = int_to_ptr.vmem [resolvable:$true] %s22
      %25 = dma.hbm_to_vmem [thread:$0]  %s0, 128, %s23, [#allocation3]
    $region5: #{tpu_custom_call.1} parent=1 // pred_fallthru
      _
    // Predicated region
    $region6: #{tpu_custom_call.1} parent=1 // pred_check
      _
    $region7: #{tpu_custom_call.1} parent=1 // pred_check_branch
      %27 = sbr.rel (0) target = $region9
    $region8: #{tpu_custom_call.1} parent=1 // pred_region
      %s29 = ssub.s32 128, 128
      %30 = vsyncadd [#allocation6], %s29
      %s31 = sshll.u32 [#allocation5], 4
      %s32 = int_to_ptr.vmem [resolvable:$true] %s31
      %37 = dma.hbm_to_vmem [thread:$0]  %s1, 128, %s32, [#allocation6], 64, 64, 4
    $region9: #{tpu_custom_call.1} parent=1 // pred_fallthru
      _
    // Predicated region
    $region10: #{tpu_custom_call.1} parent=1 // pred_check
      _
    $region11: #{tpu_custom_call.1} parent=1 // pred_check_branch
      %39 = sbr.rel (0) target = $region13
    $region12: #{tpu_custom_call.1} parent=1 // pred_region
      _
    $region13: #{tpu_custom_call.1} parent=1 // pred_fallthru
      _
    // Predicated region
    $region14: #{tpu_custom_call.1} parent=1 // pred_check
      _
    $region15: #{tpu_custom_call.1} parent=1 // pred_check_branch
      %41 = sbr.rel (0) target = $region17
    $region16: #{tpu_custom_call.1} parent=1 // pred_region
      %s43 = ssub.s32 1024, 1024
      %44 = vsyncadd [#allocation6], %s43
      %s45 = sshll.u32 [#allocation7], 4
      %s46 = int_to_ptr.vmem [resolvable:$true] %s45
      %51 = dma.hbm_to_vmem [thread:$0]  %s3, 1024, %s46, [#allocation6], 64, 64, 4
    $region17: #{tpu_custom_call.1} parent=1 // pred_fallthru
      _
    // Predicated region
    $region18: #{tpu_custom_call.1} parent=1 // pred_check
      _
    $region19: #{tpu_custom_call.1} parent=1 // pred_check_branch
      %53 = sbr.rel (0) target = $region21
    $region20: #{tpu_custom_call.1} parent=1 // pred_region
      _
    $region21: #{tpu_custom_call.1} parent=1 // pred_fallthru
      _
    // Predicated region
    $region22: #{tpu_custom_call.1} parent=1 // pred_check
      _
    $region23: #{tpu_custom_call.1} parent=1 // pred_check_branch
      %55 = sbr.rel (0) target = $region25
    $region24: #{tpu_custom_call.1} parent=1 // pred_region
      %s57 = ssub.s32 1024, 1024
      %58 = vsyncadd [#allocation9], %s57
      %s59 = sshll.u32 [#allocation8], 4
      %s60 = int_to_ptr.vmem [resolvable:$true] %s59
      %65 = dma.hbm_to_vmem [thread:$0]  %s5, 1024, %s60, [#allocation9], 64, 64, 4
    $region25: #{tpu_custom_call.1} parent=1 // pred_fallthru
      _
    // Predicated region
    $region26: #{tpu_custom_call.1} parent=1 // pred_check
      _
    $region27: #{tpu_custom_call.1} parent=1 // pred_check_branch
      %67 = sbr.rel (0) target = $region29
    $region28: #{tpu_custom_call.1} parent=1 // pred_region
      _
    $region29: #{tpu_custom_call.1} parent=1 // pred_fallthru
      _
    // Predicated region
    $region30: #{tpu_custom_call.1} parent=1 // pred_check
      _
    $region31: #{tpu_custom_call.1} parent=1 // pred_check_branch
      %69 = sbr.rel (0) target = $region33
    $region32: #{tpu_custom_call.1} parent=1 // pred_region
      %70 = dma.done [#allocation3], 128
    $region33: #{tpu_custom_call.1} parent=1 // pred_fallthru
      _
    // Predicated region
    $region34: #{tpu_custom_call.1} parent=1 // pred_check
      _
    $region35: #{tpu_custom_call.1} parent=1 // pred_check_branch
      %72 = sbr.rel (0) target = $region37
    $region36: #{tpu_custom_call.1} parent=1 // pred_region
      %73 = dma.done [#allocation6], 128
    $region37: #{tpu_custom_call.1} parent=1 // pred_fallthru
      _
    // Predicated region
    $region38: #{tpu_custom_call.1} parent=1 // pred_check
      _
    $region39: #{tpu_custom_call.1} parent=1 // pred_check_branch
      %75 = sbr.rel (0) target = $region41
    $region40: #{tpu_custom_call.1} parent=1 // pred_region
      %76 = dma.done [#allocation6], 1024
    $region41: #{tpu_custom_call.1} parent=1 // pred_fallthru
      _
    // Predicated region
    $region42: #{tpu_custom_call.1} parent=1 // pred_check
      _
    $region43: #{tpu_custom_call.1} parent=1 // pred_check_branch
      %78 = sbr.rel (0) target = $region45
    $region44: #{tpu_custom_call.1} parent=1 // pred_region
      %79 = dma.done [#allocation9], 1024
    $region45: #{tpu_custom_call.1} parent=1 // pred_fallthru
      _
    %v81 = vld [vmem:[#allocation2] sm:$0xff]
    %v82 = vld [vmem:[#allocation5] sm:$0xf]
    %v83 = vld [vmem:[#allocation5 + $0x4] sm:$0xf]
    %v84 = vld [vmem:[%s2] sm:$0x1]
    %v85 = vpack.c.bf16 %v81, %v81
    %v87 = vlaneseq
    %v88 = vshrl.u32 %v87, 7
    %v89 = vsub.s32 0, %v88
    %v90 = vrot.slane %v84, %v89
    %v94 = vunpack.c.l.b16 %v82
    %v95 = vunpack.c.l.b16 %v83
    %v96 = vpack.c.b16 %v95, %v94
    %vm98 = vcmask 130048
    %v100 = vsel %vm98, %v85, 0
    %102 = vmatprep.subr.bf16.mxu0 0
    %103 = vmatpush1.bf16.msra.mxu0 %v96
    %104 = vmatprep.subr.bf16.mxu0 0
    %105 = vmatpush1.bf16.msra.mxu0 0
    %106 = vmatprep.subr.bf16.mxu0 0
    %107 = vmatpush1.bf16.msra.mxu0 0
    %108 = vmatprep.subr.bf16.mxu0 0
    %109 = vmatpush1.bf16.msra.mxu0 0
    %110 = vmatprep.subr.bf16.mxu0 0
    %111 = vmatpush1.bf16.msra.mxu0 0
    %112 = vmatprep.subr.bf16.mxu0 0
    %113 = vmatpush1.bf16.msra.mxu0 0
    %114 = vmatprep.subr.bf16.mxu0 0
    %115 = vmatpush1.bf16.msra.mxu0 0
    %116 = vmatprep.subr.bf16.mxu0 0
    %117 = vmatpush1.bf16.msra.mxu0 0
    %118 = vmatprep.subr.bf16.mxu0 0
    %119 = vmatpush1.bf16.msra.mxu0 0
    %120 = vmatprep.subr.bf16.mxu0 0
    %121 = vmatpush1.bf16.msra.mxu0 0
    %122 = vmatprep.subr.bf16.mxu0 0
    %123 = vmatpush1.bf16.msra.mxu0 0
    %124 = vmatprep.subr.bf16.mxu0 0
    %125 = vmatpush1.bf16.msra.mxu0 0
    %126 = vmatprep.subr.bf16.mxu0 0
    %127 = vmatpush1.bf16.msra.mxu0 0
    %128 = vmatprep.subr.bf16.mxu0 0
    %129 = vmatpush1.bf16.msra.mxu0 0
    %130 = vmatprep.subr.bf16.mxu0 0
    %131 = vmatpush1.bf16.msra.mxu0 0
    %132 = vmatprep.subr.bf16.mxu0 0
    %133 = vmatpush1.bf16.msra.mxu0 0
    %134 = vmatprep.mubr.bf16.mxu0 0
    %135 = vmatmul.mubr.bf16.gmra.mrb[0].mxu0 %v100
    %v136 = vpop.f32.mrb[0].mxu0
    %v137 = vadd.f32 %v90, %v136
    %v138 = vpop.f32.mrb[0].mxu0
    %v139 = vpop.f32.mrb[0].mxu0
    %v140 = vpop.f32.mrb[0].mxu0
    %141 = vdwg.mxu0
    %v142 = vmax.f32 %v137, 0.0
    %v143 = vld [vmem:[#allocation7] sm:$0xf]
    %v144 = vld [vmem:[#allocation7 + $0x4] sm:$0xf]
    %v145 = vld [vmem:[#allocation7 + $0x8] sm:$0xf]
    %v146 = vld [vmem:[#allocation7 + $0xc] sm:$0xf]
    %v147 = vld [vmem:[#allocation7 + $0x10] sm:$0xf]
    %v148 = vld [vmem:[#allocation7 + $0x14] sm:$0xf]
    %v149 = vld [vmem:[#allocation7 + $0x18] sm:$0xf]
    %v150 = vld [vmem:[#allocation7 + $0x1c] sm:$0xf]
    %v151 = vld [vmem:[#allocation7 + $0x20] sm:$0xf]
    %v152 = vld [vmem:[#allocation7 + $0x24] sm:$0xf]
    %v153 = vld [vmem:[#allocation7 + $0x28] sm:$0xf]
    %v154 = vld [vmem:[#allocation7 + $0x2c] sm:$0xf]
    %v155 = vld [vmem:[#allocation7 + $0x30] sm:$0xf]
    %v156 = vld [vmem:[#allocation7 + $0x34] sm:$0xf]
    %v157 = vld [vmem:[#allocation7 + $0x38] sm:$0xf]
    %v158 = vld [vmem:[#allocation7 + $0x3c] sm:$0xf]
    %v159 = vld [vmem:[%s4] sm:$0x1]
    %v160 = vpack.c.bf16 %v142, %v142
    %v162 = vlaneseq
    %v163 = vshrl.u32 %v162, 7
    %v164 = vsub.s32 0, %v163
    %v165 = vrot.slane %v159, %v164
    %v183 = vunpack.c.l.b16 %v143
    %v184 = vunpack.c.l.b16 %v144
    %v185 = vunpack.c.l.b16 %v145
    %v186 = vunpack.c.l.b16 %v146
    %v187 = vunpack.c.l.b16 %v147
    %v188 = vunpack.c.l.b16 %v148
    %v189 = vunpack.c.l.b16 %v149
    %v190 = vunpack.c.l.b16 %v150
    %v191 = vunpack.c.l.b16 %v151
    %v192 = vunpack.c.l.b16 %v152
    %v193 = vunpack.c.l.b16 %v153
    %v194 = vunpack.c.l.b16 %v154
    %v195 = vunpack.c.l.b16 %v155
    %v196 = vunpack.c.l.b16 %v156
    %v197 = vunpack.c.l.b16 %v157
    %v198 = vunpack.c.l.b16 %v158
    %v199 = vpack.c.b16 %v184, %v183
    %v200 = vpack.c.b16 %v186, %v185
    %v201 = vpack.c.b16 %v188, %v187
    %v202 = vpack.c.b16 %v190, %v189
    %v203 = vpack.c.b16 %v192, %v191
    %v204 = vpack.c.b16 %v194, %v193
    %v205 = vpack.c.b16 %v196, %v195
    %v206 = vpack.c.b16 %v198, %v197
    %215 = vmatprep.subr.bf16.mxu0 0
    %216 = vmatpush1.bf16.msra.mxu0 %v199
    %217 = vmatprep.subr.bf16.mxu0 0
    %218 = vmatpush1.bf16.msra.mxu0 %v200
    %219 = vmatprep.subr.bf16.mxu0 0
    %220 = vmatpush1.bf16.msra.mxu0 %v201
    %221 = vmatprep.subr.bf16.mxu0 0
    %222 = vmatpush1.bf16.msra.mxu0 %v202
    %223 = vmatprep.subr.bf16.mxu0 0
    %224 = vmatpush1.bf16.msra.mxu0 %v203
    %225 = vmatprep.subr.bf16.mxu0 0
    %226 = vmatpush1.bf16.msra.mxu0 %v204
    %227 = vmatprep.subr.bf16.mxu0 0
    %228 = vmatpush1.bf16.msra.mxu0 %v205
    %229 = vmatprep.subr.bf16.mxu0 0
    %230 = vmatpush1.bf16.msra.mxu0 %v206
    %231 = vmatprep.subr.bf16.mxu0 0
    %232 = vmatpush1.bf16.msra.mxu0 0
    %233 = vmatprep.subr.bf16.mxu0 0
    %234 = vmatpush1.bf16.msra.mxu0 0
    %235 = vmatprep.subr.bf16.mxu0 0
    %236 = vmatpush1.bf16.msra.mxu0 0
    %237 = vmatprep.subr.bf16.mxu0 0
    %238 = vmatpush1.bf16.msra.mxu0 0
    %239 = vmatprep.subr.bf16.mxu0 0
    %240 = vmatpush1.bf16.msra.mxu0 0
    %241 = vmatprep.subr.bf16.mxu0 0
    %242 = vmatpush1.bf16.msra.mxu0 0
    %243 = vmatprep.subr.bf16.mxu0 0
    %244 = vmatpush1.bf16.msra.mxu0 0
    %245 = vmatprep.subr.bf16.mxu0 0
    %246 = vmatpush1.bf16.msra.mxu0 0
    %247 = vmatprep.mubr.bf16.mxu0 0
    %248 = vmatmul.mubr.bf16.gmra.mrb[0].mxu0 %v160
    %v249 = vpop.f32.mrb[0].mxu0
    %v250 = vadd.f32 %v165, %v249
    %v251 = vpop.f32.mrb[0].mxu0
    %v252 = vpop.f32.mrb[0].mxu0
    %v253 = vpop.f32.mrb[0].mxu0
    %254 = vdwg.mxu0
    %v255 = vmax.f32 %v250, 0.0
    %v256 = vld [vmem:[#allocation8] sm:$0xf]
    %v257 = vld [vmem:[#allocation8 + $0x4] sm:$0xf]
    %v258 = vld [vmem:[#allocation8 + $0x8] sm:$0xf]
    %v259 = vld [vmem:[#allocation8 + $0xc] sm:$0xf]
    %v260 = vld [vmem:[#allocation8 + $0x10] sm:$0xf]
    %v261 = vld [vmem:[#allocation8 + $0x14] sm:$0xf]
    %v262 = vld [vmem:[#allocation8 + $0x18] sm:$0xf]
    %v263 = vld [vmem:[#allocation8 + $0x1c] sm:$0xf]
    %v264 = vld [vmem:[#allocation8 + $0x20] sm:$0xf]
    %v265 = vld [vmem:[#allocation8 + $0x24] sm:$0xf]
    %v266 = vld [vmem:[#allocation8 + $0x28] sm:$0xf]
    %v267 = vld [vmem:[#allocation8 + $0x2c] sm:$0xf]
    %v268 = vld [vmem:[#allocation8 + $0x30] sm:$0xf]
    %v269 = vld [vmem:[#allocation8 + $0x34] sm:$0xf]
    %v270 = vld [vmem:[#allocation8 + $0x38] sm:$0xf]
    %v271 = vld [vmem:[#allocation8 + $0x3c] sm:$0xf]
    %v272 = vld [vmem:[%s6] sm:$0x1]
    %v273 = vpack.c.bf16 %v255, %v255
    %v275 = vlaneseq
    %v276 = vshrl.u32 %v275, 7
    %v277 = vsub.s32 0, %v276
    %v278 = vrot.slane %v272, %v277
    %v296 = vunpack.c.l.b16 %v256
    %v297 = vunpack.c.l.b16 %v257
    %v298 = vunpack.c.l.b16 %v258
    %v299 = vunpack.c.l.b16 %v259
    %v300 = vunpack.c.l.b16 %v260
    %v301 = vunpack.c.l.b16 %v261
    %v302 = vunpack.c.l.b16 %v262
    %v303 = vunpack.c.l.b16 %v263
    %v304 = vunpack.c.l.b16 %v264
    %v305 = vunpack.c.l.b16 %v265
    %v306 = vunpack.c.l.b16 %v266
    %v307 = vunpack.c.l.b16 %v267
    %v308 = vunpack.c.l.b16 %v268
    %v309 = vunpack.c.l.b16 %v269
    %v310 = vunpack.c.l.b16 %v270
    %v311 = vunpack.c.l.b16 %v271
    %v312 = vpack.c.b16 %v297, %v296
    %v313 = vpack.c.b16 %v299, %v298
    %v314 = vpack.c.b16 %v301, %v300
    %v315 = vpack.c.b16 %v303, %v302
    %v316 = vpack.c.b16 %v305, %v304
    %v317 = vpack.c.b16 %v307, %v306
    %v318 = vpack.c.b16 %v309, %v308
    %v319 = vpack.c.b16 %v311, %v310
    %328 = vmatprep.subr.bf16.mxu0 0
    %329 = vmatpush1.bf16.msra.mxu0 %v312
    %330 = vmatprep.subr.bf16.mxu0 0
    %331 = vmatpush1.bf16.msra.mxu0 %v313
    %332 = vmatprep.subr.bf16.mxu0 0
    %333 = vmatpush1.bf16.msra.mxu0 %v314
    %334 = vmatprep.subr.bf16.mxu0 0
    %335 = vmatpush1.bf16.msra.mxu0 %v315
    %336 = vmatprep.subr.bf16.mxu0 0
    %337 = vmatpush1.bf16.msra.mxu0 %v316
    %338 = vmatprep.subr.bf16.mxu0 0
    %339 = vmatpush1.bf16.msra.mxu0 %v317
    %340 = vmatprep.subr.bf16.mxu0 0
    %341 = vmatpush1.bf16.msra.mxu0 %v318
    %342 = vmatprep.subr.bf16.mxu0 0
    %343 = vmatpush1.bf16.msra.mxu0 %v319
    %344 = vmatprep.subr.bf16.mxu0 0
    %345 = vmatpush1.bf16.msra.mxu0 0
    %346 = vmatprep.subr.bf16.mxu0 0
    %347 = vmatpush1.bf16.msra.mxu0 0
    %348 = vmatprep.subr.bf16.mxu0 0
    %349 = vmatpush1.bf16.msra.mxu0 0
    %350 = vmatprep.subr.bf16.mxu0 0
    %351 = vmatpush1.bf16.msra.mxu0 0
    %352 = vmatprep.subr.bf16.mxu0 0
    %353 = vmatpush1.bf16.msra.mxu0 0
    %354 = vmatprep.subr.bf16.mxu0 0
    %355 = vmatpush1.bf16.msra.mxu0 0
    %356 = vmatprep.subr.bf16.mxu0 0
    %357 = vmatpush1.bf16.msra.mxu0 0
    %358 = vmatprep.subr.bf16.mxu0 0
    %359 = vmatpush1.bf16.msra.mxu0 0
    %360 = vmatprep.mubr.bf16.mxu0 0
    %361 = vmatmul.mubr.bf16.gmra.mrb[0].mxu0 %v273
    %v362 = vpop.f32.mrb[0].mxu0
    %v363 = vadd.f32 %v278, %v362
    %v364 = vpop.f32.mrb[0].mxu0
    %v365 = vpop.f32.mrb[0].mxu0
    %v366 = vpop.f32.mrb[0].mxu0
    %367 = vdwg.mxu0
    %v368 = vmax.f32 %v363, 0.0
    %369 = vst [vmem:[#allocation10] sm:$0xff] %v368
    // Predicated region
    $region46: #{tpu_custom_call.1} parent=1 // pred_check
      _
    $region47: #{tpu_custom_call.1} parent=1 // pred_check_branch
      %371 = sbr.rel (0) target = $region49
    $region48: #{tpu_custom_call.1} parent=1 // pred_region
      %s373 = ssub.s32 128, 128
      %374 = vsyncadd [#allocation4], %s373
      %s376 = sshll.u32 [#allocation10], 4
      %s377 = int_to_ptr.vmem [resolvable:$true] %s376
      %379 = dma.vmem_to_hbm [thread:$0]  %s377, 128, %s7, [#allocation4]
    $region49: #{tpu_custom_call.1} parent=1 // pred_fallthru
      _
    // Predicated region
    $region50: #{tpu_custom_call.1} parent=1 // pred_check
      _
    $region51: #{tpu_custom_call.1} parent=1 // pred_check_branch
      %381 = sbr.rel (0) target = $region53
    $region52: #{tpu_custom_call.1} parent=1 // pred_region
      %382 = dma.done [#allocation4], 128
    $region53: #{tpu_custom_call.1} parent=1 // pred_fallthru
      _
    %383 = vsyncpa [#allocation3], 1
    %384 = vsyncpa [#allocation6], 1
    %385 = vsyncpa [#allocation9], 1
    %386 = vsyncpa [#allocation4], 1

// kernel: _lambda_.1
$region0: #{_lambda_.1}
  #allocation0 [shape = 'u32[]', space=smem, size = 0x4, offset = 0x4, fixed_abs, tag = 'smem constant byte address 0x4 - core index']
  #allocation1 [shape = 'u32[144,128]{1,0:T(1,128)}', space=vmem, size = 0x12000, scoped, tag = 'internal scratch']
  %s0 = inlined_call_operand.vmem [shape: f32[8,16], index: 0, kind: input, shape index: {}]
  %s1 = inlined_call_operand.vmem [shape: bf16[16,128], index: 1, kind: input, shape index: {}]
  %s2 = inlined_call_operand.vmem [shape: f32[1,128], index: 2, kind: input, shape index: {}]
  %s3 = inlined_call_operand.hbm [shape: bf16[128,128], index: 3, kind: input, shape index: {}]
  %s4 = inlined_call_operand.vmem [shape: f32[1,128], index: 4, kind: input, shape index: {}]
  %s5 = inlined_call_operand.hbm [shape: bf16[128,128], index: 5, kind: input, shape index: {}]
  %s6 = inlined_call_operand.vmem [shape: f32[1,128], index: 6, kind: input, shape index: {}]
  %s7 = inlined_call_operand.vmem [shape: f32[8,128], index: 7, kind: output, shape index: {}]
  %s8 = sld [smem:[#allocation0]]
  $region46: #{_lambda_.1} parent=0
    _
  %s10 = ssub.s32 1, %s8
  %s11 = scalar_select 0, %s10, %s8
  $region1: #{_lambda_.1} parent=0
    #allocation2 [shape = 'u8[32768]{0}', space=vmem, size = 0x8000, scoped, tag = 'input window, operand 3, single buffered']
    #allocation3 [shape = 's32[1]{0}', space=sflag, size = 0x4, scoped, tag = 'scoped memory for _lambda_.1']
    #allocation4 [shape = 'u8[32768]{0}', space=vmem, size = 0x8000, scoped, tag = 'input window, operand 5, single buffered']
    #allocation5 [shape = 's32[1]{0}', space=sflag, size = 0x4, scoped, tag = 'scoped memory for _lambda_.1']
    %12 = vsyncpa [#allocation3], 0
    %13 = vsyncpa [#allocation5], 0
    // Predicated region
    $region2: #{_lambda_.1} parent=1 // pred_check
      _
    $region3: #{_lambda_.1} parent=1 // pred_check_branch
      %15 = sbr.rel (0) target = $region5
    $region4: #{_lambda_.1} parent=1 // pred_region
      _
    $region5: #{_lambda_.1} parent=1 // pred_fallthru
      _
    // Predicated region
    $region6: #{_lambda_.1} parent=1 // pred_check
      _
    $region7: #{_lambda_.1} parent=1 // pred_check_branch
      %17 = sbr.rel (0) target = $region9
    $region8: #{_lambda_.1} parent=1 // pred_region
      _
    $region9: #{_lambda_.1} parent=1 // pred_fallthru
      _
    // Predicated region
    $region10: #{_lambda_.1} parent=1 // pred_check
      _
    $region11: #{_lambda_.1} parent=1 // pred_check_branch
      %19 = sbr.rel (0) target = $region13
    $region12: #{_lambda_.1} parent=1 // pred_region
      _
    $region13: #{_lambda_.1} parent=1 // pred_fallthru
      _
    // Predicated region
    $region14: #{_lambda_.1} parent=1 // pred_check
      _
    $region15: #{_lambda_.1} parent=1 // pred_check_branch
      %21 = sbr.rel (0) target = $region17
    $region16: #{_lambda_.1} parent=1 // pred_region
      %s23 = ssub.s32 1024, 1024
      %24 = vsyncadd [#allocation3], %s23
      %s25 = sshll.u32 [#allocation2], 4
      %s26 = int_to_ptr.vmem [resolvable:$true] %s25
      %31 = dma.hbm_to_vmem [thread:$0]  %s3, 1024, %s26, [#allocation3], 64, 64, 4
    $region17: #{_lambda_.1} parent=1 // pred_fallthru
      _
    // Predicated region
    $region18: #{_lambda_.1} parent=1 // pred_check
      _
    $region19: #{_lambda_.1} parent=1 // pred_check_branch
      %33 = sbr.rel (0) target = $region21
    $region20: #{_lambda_.1} parent=1 // pred_region
      _
    $region21: #{_lambda_.1} parent=1 // pred_fallthru
      _
    // Predicated region
    $region22: #{_lambda_.1} parent=1 // pred_check
      _
    $region23: #{_lambda_.1} parent=1 // pred_check_branch
      %35 = sbr.rel (0) target = $region25
    $region24: #{_lambda_.1} parent=1 // pred_region
      %s37 = ssub.s32 1024, 1024
      %38 = vsyncadd [#allocation5], %s37
      %s39 = sshll.u32 [#allocation4], 4
      %s40 = int_to_ptr.vmem [resolvable:$true] %s39
      %45 = dma.hbm_to_vmem [thread:$0]  %s5, 1024, %s40, [#allocation5], 64, 64, 4
    $region25: #{_lambda_.1} parent=1 // pred_fallthru
      _
    // Predicated region
    $region26: #{_lambda_.1} parent=1 // pred_check
      _
    $region27: #{_lambda_.1} parent=1 // pred_check_branch
      %47 = sbr.rel (0) target = $region29
    $region28: #{_lambda_.1} parent=1 // pred_region
      _
    $region29: #{_lambda_.1} parent=1 // pred_fallthru
      _
    // Predicated region
    $region30: #{_lambda_.1} parent=1 // pred_check
      _
    $region31: #{_lambda_.1} parent=1 // pred_check_branch
      %49 = sbr.rel (0) target = $region33
    $region32: #{_lambda_.1} parent=1 // pred_region
      %50 = dma.done [#allocation3], 1024
    $region33: #{_lambda_.1} parent=1 // pred_fallthru
      _
    // Predicated region
    $region34: #{_lambda_.1} parent=1 // pred_check
      _
    $region35: #{_lambda_.1} parent=1 // pred_check_branch
      %52 = sbr.rel (0) target = $region37
    $region36: #{_lambda_.1} parent=1 // pred_region
      %53 = dma.done [#allocation5], 1024
    $region37: #{_lambda_.1} parent=1 // pred_fallthru
      _
    %v55 = vld [vmem:[%s0] sm:$0xff]
    %v56 = vld [vmem:[%s1] sm:$0xf]
    %v57 = vld [vmem:[%s1 + $0x4] sm:$0xf]
    %v58 = vld [vmem:[%s2] sm:$0x1]
    %v59 = vpack.c.bf16 %v55, %v55
    %v61 = vlaneseq
    %v62 = vshrl.u32 %v61, 7
    %v63 = vsub.s32 0, %v62
    %v64 = vrot.slane %v58, %v63
    %v68 = vunpack.c.l.b16 %v56
    %v69 = vunpack.c.l.b16 %v57
    %v70 = vpack.c.b16 %v69, %v68
    %vm72 = vcmask 130048
    %v74 = vsel %vm72, %v59, 0
    %76 = vmatprep.subr.bf16.mxu0 0
    %77 = vmatpush1.bf16.msra.mxu0 %v70
    %78 = vmatprep.subr.bf16.mxu0 0
    %79 = vmatpush1.bf16.msra.mxu0 0
    %80 = vmatprep.subr.bf16.mxu0 0
    %81 = vmatpush1.bf16.msra.mxu0 0
    %82 = vmatprep.subr.bf16.mxu0 0
    %83 = vmatpush1.bf16.msra.mxu0 0
    %84 = vmatprep.subr.bf16.mxu0 0
    %85 = vmatpush1.bf16.msra.mxu0 0
    %86 = vmatprep.subr.bf16.mxu0 0
    %87 = vmatpush1.bf16.msra.mxu0 0
    %88 = vmatprep.subr.bf16.mxu0 0
    %89 = vmatpush1.bf16.msra.mxu0 0
    %90 = vmatprep.subr.bf16.mxu0 0
    %91 = vmatpush1.bf16.msra.mxu0 0
    %92 = vmatprep.subr.bf16.mxu0 0
    %93 = vmatpush1.bf16.msra.mxu0 0
    %94 = vmatprep.subr.bf16.mxu0 0
    %95 = vmatpush1.bf16.msra.mxu0 0
    %96 = vmatprep.subr.bf16.mxu0 0
    %97 = vmatpush1.bf16.msra.mxu0 0
    %98 = vmatprep.subr.bf16.mxu0 0
    %99 = vmatpush1.bf16.msra.mxu0 0
    %100 = vmatprep.subr.bf16.mxu0 0
    %101 = vmatpush1.bf16.msra.mxu0 0
    %102 = vmatprep.subr.bf16.mxu0 0
    %103 = vmatpush1.bf16.msra.mxu0 0
    %104 = vmatprep.subr.bf16.mxu0 0
    %105 = vmatpush1.bf16.msra.mxu0 0
    %106 = vmatprep.subr.bf16.mxu0 0
    %107 = vmatpush1.bf16.msra.mxu0 0
    %108 = vmatprep.mubr.bf16.mxu0 0
    %109 = vmatmul.mubr.bf16.gmra.mrb[0].mxu0 %v74
    %v110 = vpop.f32.mrb[0].mxu0
    %v111 = vadd.f32 %v64, %v110
    %v112 = vpop.f32.mrb[0].mxu0
    %v113 = vpop.f32.mrb[0].mxu0
    %v114 = vpop.f32.mrb[0].mxu0
    %115 = vdwg.mxu0
    %v116 = vmax.f32 %v111, 0.0
    %v117 = vld [vmem:[#allocation2] sm:$0xf]
    %v118 = vld [vmem:[#allocation2 + $0x4] sm:$0xf]
    %v119 = vld [vmem:[#allocation2 + $0x8] sm:$0xf]
    %v120 = vld [vmem:[#allocation2 + $0xc] sm:$0xf]
    %v121 = vld [vmem:[#allocation2 + $0x10] sm:$0xf]
    %v122 = vld [vmem:[#allocation2 + $0x14] sm:$0xf]
    %v123 = vld [vmem:[#allocation2 + $0x18] sm:$0xf]
    %v124 = vld [vmem:[#allocation2 + $0x1c] sm:$0xf]
    %v125 = vld [vmem:[#allocation2 + $0x20] sm:$0xf]
    %v126 = vld [vmem:[#allocation2 + $0x24] sm:$0xf]
    %v127 = vld [vmem:[#allocation2 + $0x28] sm:$0xf]
    %v128 = vld [vmem:[#allocation2 + $0x2c] sm:$0xf]
    %v129 = vld [vmem:[#allocation2 + $0x30] sm:$0xf]
    %v130 = vld [vmem:[#allocation2 + $0x34] sm:$0xf]
    %v131 = vld [vmem:[#allocation2 + $0x38] sm:$0xf]
    %v132 = vld [vmem:[#allocation2 + $0x3c] sm:$0xf]
    %v133 = vld [vmem:[%s4] sm:$0x1]
    %v134 = vpack.c.bf16 %v116, %v116
    %v136 = vlaneseq
    %v137 = vshrl.u32 %v136, 7
    %v138 = vsub.s32 0, %v137
    %v139 = vrot.slane %v133, %v138
    %v157 = vunpack.c.l.b16 %v117
    %v158 = vunpack.c.l.b16 %v118
    %v159 = vunpack.c.l.b16 %v119
    %v160 = vunpack.c.l.b16 %v120
    %v161 = vunpack.c.l.b16 %v121
    %v162 = vunpack.c.l.b16 %v122
    %v163 = vunpack.c.l.b16 %v123
    %v164 = vunpack.c.l.b16 %v124
    %v165 = vunpack.c.l.b16 %v125
    %v166 = vunpack.c.l.b16 %v126
    %v167 = vunpack.c.l.b16 %v127
    %v168 = vunpack.c.l.b16 %v128
    %v169 = vunpack.c.l.b16 %v129
    %v170 = vunpack.c.l.b16 %v130
    %v171 = vunpack.c.l.b16 %v131
    %v172 = vunpack.c.l.b16 %v132
    %v173 = vpack.c.b16 %v158, %v157
    %v174 = vpack.c.b16 %v160, %v159
    %v175 = vpack.c.b16 %v162, %v161
    %v176 = vpack.c.b16 %v164, %v163
    %v177 = vpack.c.b16 %v166, %v165
    %v178 = vpack.c.b16 %v168, %v167
    %v179 = vpack.c.b16 %v170, %v169
    %v180 = vpack.c.b16 %v172, %v171
    %189 = vmatprep.subr.bf16.mxu0 0
    %190 = vmatpush1.bf16.msra.mxu0 %v173
    %191 = vmatprep.subr.bf16.mxu0 0
    %192 = vmatpush1.bf16.msra.mxu0 %v174
    %193 = vmatprep.subr.bf16.mxu0 0
    %194 = vmatpush1.bf16.msra.mxu0 %v175
    %195 = vmatprep.subr.bf16.mxu0 0
    %196 = vmatpush1.bf16.msra.mxu0 %v176
    %197 = vmatprep.subr.bf16.mxu0 0
    %198 = vmatpush1.bf16.msra.mxu0 %v177
    %199 = vmatprep.subr.bf16.mxu0 0
    %200 = vmatpush1.bf16.msra.mxu0 %v178
    %201 = vmatprep.subr.bf16.mxu0 0
    %202 = vmatpush1.bf16.msra.mxu0 %v179
    %203 = vmatprep.subr.bf16.mxu0 0
    %204 = vmatpush1.bf16.msra.mxu0 %v180
    %205 = vmatprep.subr.bf16.mxu0 0
    %206 = vmatpush1.bf16.msra.mxu0 0
    %207 = vmatprep.subr.bf16.mxu0 0
    %208 = vmatpush1.bf16.msra.mxu0 0
    %209 = vmatprep.subr.bf16.mxu0 0
    %210 = vmatpush1.bf16.msra.mxu0 0
    %211 = vmatprep.subr.bf16.mxu0 0
    %212 = vmatpush1.bf16.msra.mxu0 0
    %213 = vmatprep.subr.bf16.mxu0 0
    %214 = vmatpush1.bf16.msra.mxu0 0
    %215 = vmatprep.subr.bf16.mxu0 0
    %216 = vmatpush1.bf16.msra.mxu0 0
    %217 = vmatprep.subr.bf16.mxu0 0
    %218 = vmatpush1.bf16.msra.mxu0 0
    %219 = vmatprep.subr.bf16.mxu0 0
    %220 = vmatpush1.bf16.msra.mxu0 0
    %221 = vmatprep.mubr.bf16.mxu0 0
    %222 = vmatmul.mubr.bf16.gmra.mrb[0].mxu0 %v134
    %v223 = vpop.f32.mrb[0].mxu0
    %v224 = vadd.f32 %v139, %v223
    %v225 = vpop.f32.mrb[0].mxu0
    %v226 = vpop.f32.mrb[0].mxu0
    %v227 = vpop.f32.mrb[0].mxu0
    %228 = vdwg.mxu0
    %v229 = vmax.f32 %v224, 0.0
    %v230 = vld [vmem:[#allocation4] sm:$0xf]
    %v231 = vld [vmem:[#allocation4 + $0x4] sm:$0xf]
    %v232 = vld [vmem:[#allocation4 + $0x8] sm:$0xf]
    %v233 = vld [vmem:[#allocation4 + $0xc] sm:$0xf]
    %v234 = vld [vmem:[#allocation4 + $0x10] sm:$0xf]
    %v235 = vld [vmem:[#allocation4 + $0x14] sm:$0xf]
    %v236 = vld [vmem:[#allocation4 + $0x18] sm:$0xf]
    %v237 = vld [vmem:[#allocation4 + $0x1c] sm:$0xf]
    %v238 = vld [vmem:[#allocation4 + $0x20] sm:$0xf]
    %v239 = vld [vmem:[#allocation4 + $0x24] sm:$0xf]
    %v240 = vld [vmem:[#allocation4 + $0x28] sm:$0xf]
    %v241 = vld [vmem:[#allocation4 + $0x2c] sm:$0xf]
    %v242 = vld [vmem:[#allocation4 + $0x30] sm:$0xf]
    %v243 = vld [vmem:[#allocation4 + $0x34] sm:$0xf]
    %v244 = vld [vmem:[#allocation4 + $0x38] sm:$0xf]
    %v245 = vld [vmem:[#allocation4 + $0x3c] sm:$0xf]
    %v246 = vld [vmem:[%s6] sm:$0x1]
    %v247 = vpack.c.bf16 %v229, %v229
    %v249 = vlaneseq
    %v250 = vshrl.u32 %v249, 7
    %v251 = vsub.s32 0, %v250
    %v252 = vrot.slane %v246, %v251
    %v270 = vunpack.c.l.b16 %v230
    %v271 = vunpack.c.l.b16 %v231
    %v272 = vunpack.c.l.b16 %v232
    %v273 = vunpack.c.l.b16 %v233
    %v274 = vunpack.c.l.b16 %v234
    %v275 = vunpack.c.l.b16 %v235
    %v276 = vunpack.c.l.b16 %v236
    %v277 = vunpack.c.l.b16 %v237
    %v278 = vunpack.c.l.b16 %v238
    %v279 = vunpack.c.l.b16 %v239
    %v280 = vunpack.c.l.b16 %v240
    %v281 = vunpack.c.l.b16 %v241
    %v282 = vunpack.c.l.b16 %v242
    %v283 = vunpack.c.l.b16 %v243
    %v284 = vunpack.c.l.b16 %v244
    %v285 = vunpack.c.l.b16 %v245
    %v286 = vpack.c.b16 %v271, %v270
    %v287 = vpack.c.b16 %v273, %v272
    %v288 = vpack.c.b16 %v275, %v274
    %v289 = vpack.c.b16 %v277, %v276
    %v290 = vpack.c.b16 %v279, %v278
    %v291 = vpack.c.b16 %v281, %v280
    %v292 = vpack.c.b16 %v283, %v282
    %v293 = vpack.c.b16 %v285, %v284
    %302 = vmatprep.subr.bf16.mxu0 0
    %303 = vmatpush1.bf16.msra.mxu0 %v286
    %304 = vmatprep.subr.bf16.mxu0 0
    %305 = vmatpush1.bf16.msra.mxu0 %v287
    %306 = vmatprep.subr.bf16.mxu0 0
    %307 = vmatpush1.bf16.msra.mxu0 %v288
    %308 = vmatprep.subr.bf16.mxu0 0
    %309 = vmatpush1.bf16.msra.mxu0 %v289
    %310 = vmatprep.subr.bf16.mxu0 0
    %311 = vmatpush1.bf16.msra.mxu0 %v290
    %312 = vmatprep.subr.bf16.mxu0 0
    %313 = vmatpush1.bf16.msra.mxu0 %v291
    %314 = vmatprep.subr.bf16.mxu0 0
    %315 = vmatpush1.bf16.msra.mxu0 %v292
    %316 = vmatprep.subr.bf16.mxu0 0
    %317 = vmatpush1.bf16.msra.mxu0 %v293
    %318 = vmatprep.subr.bf16.mxu0 0
    %319 = vmatpush1.bf16.msra.mxu0 0
    %320 = vmatprep.subr.bf16.mxu0 0
    %321 = vmatpush1.bf16.msra.mxu0 0
    %322 = vmatprep.subr.bf16.mxu0 0
    %323 = vmatpush1.bf16.msra.mxu0 0
    %324 = vmatprep.subr.bf16.mxu0 0
    %325 = vmatpush1.bf16.msra.mxu0 0
    %326 = vmatprep.subr.bf16.mxu0 0
    %327 = vmatpush1.bf16.msra.mxu0 0
    %328 = vmatprep.subr.bf16.mxu0 0
    %329 = vmatpush1.bf16.msra.mxu0 0
    %330 = vmatprep.subr.bf16.mxu0 0
    %331 = vmatpush1.bf16.msra.mxu0 0
    %332 = vmatprep.subr.bf16.mxu0 0
    %333 = vmatpush1.bf16.msra.mxu0 0
    %334 = vmatprep.mubr.bf16.mxu0 0
    %335 = vmatmul.mubr.bf16.gmra.mrb[0].mxu0 %v247
    %v336 = vpop.f32.mrb[0].mxu0
    %v337 = vadd.f32 %v252, %v336
    %v338 = vpop.f32.mrb[0].mxu0
    %v339 = vpop.f32.mrb[0].mxu0
    %v340 = vpop.f32.mrb[0].mxu0
    %341 = vdwg.mxu0
    %v342 = vmax.f32 %v337, 0.0
    %343 = vst [vmem:[%s7] sm:$0xff] %v342
    // Predicated region
    $region38: #{_lambda_.1} parent=1 // pred_check
      _
    $region39: #{_lambda_.1} parent=1 // pred_check_branch
      %345 = sbr.rel (0) target = $region41
    $region40: #{_lambda_.1} parent=1 // pred_region
      _
    $region41: #{_lambda_.1} parent=1 // pred_fallthru
      _
    // Predicated region
    $region42: #{_lambda_.1} parent=1 // pred_check
      _
    $region43: #{_lambda_.1} parent=1 // pred_check_branch
      %347 = sbr.rel (0) target = $region45
    $region44: #{_lambda_.1} parent=1 // pred_region
      _
    $region45: #{_lambda_.1} parent=1 // pred_fallthru
      _
    %348 = vsyncpa [#allocation3], 1
    %349 = vsyncpa [#allocation5], 1

</llo_original>
